<compile_context>
chip_gen: v6e
topology: v6e:2x2x1
jax: 0.10.0
libtpu: 0.0.40
codegen_flags: <defaults>
</compile_context>

<pallas_src>
import jax
import jax.numpy as jnp
from jax.experimental import pallas as pl
from jax.experimental.pallas import tpu as pltpu

_LANE = 128
_MAX_TILE_HW = 8192            # 8192 lanes * 64 ch * 4 B = 2 MiB input tile
_FOLD_BATCH_BYTES = 4 << 20    # fold batch into one block when x tile <= 4 MiB


def _conv1x1_kernel(x_ref, w_ref, b_ref, o_ref):
    # x_ref: (n_blk, C_in, tile_hw)   w_ref: (C_out, C_in)   b_ref: (C_out, 1)
    # o_ref: (n_blk, C_out, tile_hw)
    w = w_ref[...]
    b = b_ref[...]
    # n_blk is a small static Python int -> unrolled loop of plain MXU dots
    # (avoids any in-kernel reshape/transpose of the lane dim).
    for n in range(x_ref.shape[0]):
        acc = jnp.dot(w, x_ref[n], preferred_element_type=jnp.float32)
        o_ref[n] = (acc + b).astype(o_ref.dtype)


def _plan_tiles(N, C_in, HW, itemsize):
    """Pick (n_blk, tile_hw, grid): lane-dense tiles, cdiv tail, >=2 steps."""
    if HW <= _LANE:
        tile_hw = HW                                   # full extent, tiny image
    else:
        tile_hw = min((HW // _LANE) * _LANE, _MAX_TILE_HW)

    # Fold the whole batch into one block for tiny problems (amortize the
    # fixed per-grid-step pipeline overhead); otherwise one image per step.
    n_blk = N if N * C_in * tile_hw * itemsize <= _FOLD_BATCH_BYTES else 1

    grid_n = pl.cdiv(N, n_blk)
    grid_hw = pl.cdiv(HW, tile_hw)

    # Guarantee >=2 independent grid steps when possible so dual-TensorCore
    # chips (v7x) can shard the "parallel" axes across both cores.
    if grid_n * grid_hw < 2:
        if tile_hw >= 2 * _LANE:
            half = pl.cdiv(tile_hw, 2)
            tile_hw = pl.cdiv(half, _LANE) * _LANE
            grid_hw = pl.cdiv(HW, tile_hw)
        elif n_blk >= 2:
            n_blk = pl.cdiv(n_blk, 2)
            grid_n = pl.cdiv(N, n_blk)

    return n_blk, tile_hw, (grid_n, grid_hw)


@jax.jit
def conv1x1_nchw(x, weight, bias):
    """1x1 conv, NCHW in / NCHW out (PyTorch nn.Conv2d(64, out, 1) semantics).

    x:      (N, C_in, H, W)
    weight: (C_out, C_in)   -- squeezed from PyTorch (C_out, C_in, 1, 1)
    bias:   (C_out,)
    """
    N, C_in, H, W = x.shape
    C_out = weight.shape[0]
    HW = H * W

    n_blk, tile_hw, grid = _plan_tiles(N, C_in, HW, x.dtype.itemsize)

    # Free reshape (last dims contiguous): NCHW -> (N, C_in, HW).
    x_flat = x.reshape(N, C_in, HW)
    w = weight.astype(x.dtype)                          # (C_out, C_in)
    b2d = bias.reshape(C_out, 1).astype(jnp.float32)    # f32 bias, f32 accum

    out_flat = pl.pallas_call(
        _conv1x1_kernel,
        out_shape=jax.ShapeDtypeStruct((N, C_out, HW), x.dtype),
        grid_spec=pltpu.PrefetchScalarGridSpec(
            num_scalar_prefetch=0,
            grid=grid,
            in_specs=[
                # Activation tile: (n_blk, C_in, tile_hw), lanes = spatial.
                pl.BlockSpec((n_blk, C_in, tile_hw), lambda i, j: (i, 0, j)),
                # Weight: resident, constant index map.
                pl.BlockSpec((C_out, C_in), lambda i, j: (0, 0)),
                # Bias: resident, constant index map.
                pl.BlockSpec((C_out, 1), lambda i, j: (0, 0)),
            ],
            out_specs=pl.BlockSpec((n_blk, C_out, tile_hw),
                                   lambda i, j: (i, 0, j)),
        ),
        compiler_params=pltpu.CompilerParams(
            dimension_semantics=("parallel", "parallel"),
        ),
    )(x_flat, w, b2d)

    # Free reshape back: (N, C_out, HW) -> (N, C_out, H, W).
    return out_flat.reshape(N, C_out, H, W)


def reference_conv1x1_nchw(x, weight, bias):
    y = jnp.einsum("nchw,oc->nohw", x, weight)
    return y + bias[None, :, None, None]


def _run_case(key, N, C_in, C_out, H, W):
    k_x, k_w, k_b = jax.random.split(key, 3)
    x = jax.random.normal(k_x, (N, C_in, H, W), dtype=jnp.float32)
    bound = 1.0 / (C_in ** 0.5)
    weight = jax.random.uniform(k_w, (C_out, C_in), minval=-bound,
                                maxval=bound, dtype=jnp.float32)
    bias = jax.random.uniform(k_b, (C_out,), minval=-bound,
                              maxval=bound, dtype=jnp.float32)

    y = jax.block_until_ready(conv1x1_nchw(x, weight, bias))
    y_ref = reference_conv1x1_nchw(x, weight, bias)
    assert y.shape == (N, C_out, H, W), y.shape
    assert jnp.allclose(y, y_ref, atol=1e-5, rtol=1e-5), \
        float(jnp.max(jnp.abs(y - y_ref)))


if __name__ == "__main__":
    key = jax.random.PRNGKey(0)
    k0, k1 = jax.random.split(key)

    # Shipped module shape: Conv2d(64, out_size=8, kernel_size=1), N=2, 16x16.
    _run_case(k0, N=2, C_in=64, C_out=8, H=16, W=16)

    # Exercise the cdiv tail path (HW = 400, not a multiple of 128) and the
    # non-folded batch / partial trailing spatial block handling.
    _run_case(k1, N=1, C_in=64, C_out=8, H=20, W=20)

    print("KERNEL_OK")
</pallas_src>

<mosaic_0001>
module attributes {stable_mosaic.version = 11 : i64} {
  func.func @_conv1x1_kernel(%arg0: i32, %arg1: i32, %arg2: memref<2x64x128xf32, #tpu.memory_space<vmem>>, %arg3: memref<8x64xf32, #tpu.memory_space<vmem>>, %arg4: memref<8x1xf32, #tpu.memory_space<vmem>>, %arg5: memref<2x8x128xf32, #tpu.memory_space<vmem>>) attributes {dimension_semantics = [#tpu.dimension_semantics<parallel>, #tpu.dimension_semantics<parallel>], iteration_bounds = array<i64: 1, 2>, scalar_prefetch = 0 : i64, scratch_operands = 0 : i64, tpu.core_type = #tpu.core_type<tc>, window_params = [{transform_indices = @transform_0, window_bounds = array<i64: 2, 64, 128>}, {pipeline_mode = #tpu.pipeline_mode<synchronous>, transform_indices = @transform_1, window_bounds = array<i64: 8, 64>}, {pipeline_mode = #tpu.pipeline_mode<synchronous>, transform_indices = @transform_2, window_bounds = array<i64: 8, 1>}, {transform_indices = @transform_3, window_bounds = array<i64: 2, 8, 128>}]} {
    %c0 = arith.constant 0 : index
    %c0_0 = arith.constant 0 : index
    %0 = vector.load %arg3[%c0, %c0_0] : memref<8x64xf32, #tpu.memory_space<vmem>>, vector<8x64xf32>
    %c0_1 = arith.constant 0 : index
    %c0_2 = arith.constant 0 : index
    %1 = vector.load %arg4[%c0_1, %c0_2] : memref<8x1xf32, #tpu.memory_space<vmem>>, vector<8x1xf32>
    %c0_3 = arith.constant 0 : index
    %c0_4 = arith.constant 0 : index
    %c0_5 = arith.constant 0 : index
    %2 = vector.load %arg2[%c0_3, %c0_4, %c0_5] : memref<2x64x128xf32, #tpu.memory_space<vmem>>, vector<1x64x128xf32>
    %3 = vector.shape_cast %2 : vector<1x64x128xf32> to vector<64x128xf32>
    %cst = arith.constant dense<0.000000e+00> : vector<8x128xf32>
    %4 = tpu.matmul %0, %3, %cst {dimension_numbers = #tpu.dot_dimension_numbers<[1], [0], [0], [1], [0, 0, 1, 1], [], []>} : vector<8x64xf32>, vector<64x128xf32>, vector<8x128xf32> -> vector<8x128xf32>
    %5 = vector.broadcast %1 : vector<8x1xf32> to vector<8x128xf32>
    %6 = arith.addf %4, %5 : vector<8x128xf32>
    %c0_6 = arith.constant 0 : index
    %c0_7 = arith.constant 0 : index
    %c0_8 = arith.constant 0 : index
    %7 = vector.load %arg5[%c0_6, %c0_7, %c0_8] : memref<2x8x128xf32, #tpu.memory_space<vmem>>, vector<1x8x128xf32>
    %8 = vector.shape_cast %7 : vector<1x8x128xf32> to vector<8x128xf32>
    %9 = vector.shape_cast %6 : vector<8x128xf32> to vector<1x8x128xf32>
    tpu.vector_store %arg5[%c0_6, %c0_7, %c0_8], %9 {strides = array<i32>} : memref<2x8x128xf32, #tpu.memory_space<vmem>>, vector<1x8x128xf32>,
    %c1 = arith.constant 1 : index
    %c0_9 = arith.constant 0 : index
    %c0_10 = arith.constant 0 : index
    %10 = vector.load %arg2[%c1, %c0_9, %c0_10] : memref<2x64x128xf32, #tpu.memory_space<vmem>>, vector<1x64x128xf32>
    %11 = vector.shape_cast %10 : vector<1x64x128xf32> to vector<64x128xf32>
    %cst_11 = arith.constant dense<0.000000e+00> : vector<8x128xf32>
    %12 = tpu.matmul %0, %11, %cst_11 {dimension_numbers = #tpu.dot_dimension_numbers<[1], [0], [0], [1], [0, 0, 1, 1], [], []>} : vector<8x64xf32>, vector<64x128xf32>, vector<8x128xf32> -> vector<8x128xf32>
    %13 = vector.broadcast %1 : vector<8x1xf32> to vector<8x128xf32>
    %14 = arith.addf %12, %13 : vector<8x128xf32>
    %c1_12 = arith.constant 1 : index
    %c0_13 = arith.constant 0 : index
    %c0_14 = arith.constant 0 : index
    %15 = vector.load %arg5[%c1_12, %c0_13, %c0_14] : memref<2x8x128xf32, #tpu.memory_space<vmem>>, vector<1x8x128xf32>
    %16 = vector.shape_cast %15 : vector<1x8x128xf32> to vector<8x128xf32>
    %17 = vector.shape_cast %14 : vector<8x128xf32> to vector<1x8x128xf32>
    tpu.vector_store %arg5[%c1_12, %c0_13, %c0_14], %17 {strides = array<i32>} : memref<2x8x128xf32, #tpu.memory_space<vmem>>, vector<1x8x128xf32>,
    return
  }
  func.func @transform_0(%arg0: i32, %arg1: i32) -> (i32, i32, i32) {
    %c0_i32 = arith.constant 0 : i32
    %c0_i32_0 = arith.constant 0 : i32
    return %arg0, %c0_i32, %arg1 : i32, i32, i32
  }
  func.func @transform_1(%arg0: i32, %arg1: i32) -> (i32, i32) {
    %c0_i32 = arith.constant 0 : i32
    %c0_i32_0 = arith.constant 0 : i32
    %c0_i32_1 = arith.constant 0 : i32
    return %c0_i32, %c0_i32_0 : i32, i32
  }
  func.func @transform_2(%arg0: i32, %arg1: i32) -> (i32, i32) {
    %c0_i32 = arith.constant 0 : i32
    %c0_i32_0 = arith.constant 0 : i32
    %c0_i32_1 = arith.constant 0 : i32
    return %c0_i32, %c0_i32_0 : i32, i32
  }
  func.func @transform_3(%arg0: i32, %arg1: i32) -> (i32, i32, i32) {
    %c0_i32 = arith.constant 0 : i32
    %c0_i32_0 = arith.constant 0 : i32
    return %arg0, %c0_i32, %arg1 : i32, i32, i32
  }
}

</mosaic_0001>

<llo_original>
// kernel: conv1x1_nchw.1
$region0: #{conv1x1_nchw.1}
  #allocation0 [shape = 'u32[]', space=smem, size = 0x4, offset = 0x4, fixed_abs, tag = 'smem constant byte address 0x4 - core index']
  #allocation1 [shape = 'u32[144,128]{1,0:T(1,128)}', space=vmem, size = 0x12000, scoped, tag = 'internal scratch']
  %s0 = inlined_call_operand.vmem [shape: f32[2,64,256], index: 0, kind: input, shape index: {}]
  %s1 = inlined_call_operand.vmem [shape: f32[8,64], index: 1, kind: input, shape index: {}]
  %s2 = inlined_call_operand.vmem [shape: f32[8,1], index: 2, kind: input, shape index: {}]
  %s3 = inlined_call_operand.vmem [shape: f32[2,8,256], index: 3, kind: output, shape index: {}]
  %s4 = sld [smem:[#allocation0]]
  $region117: #{conv1x1_nchw.1} parent=0
    _
  %s6 = ssub.s32 1, %s4
  %s7 = scalar_select 0, %s6, %s4
  $region1: #{conv1x1_nchw.1} parent=0
    #allocation2 [shape = 'u8[131072]{0}', space=vmem, size = 0x20000, scoped, tag = 'input window, operand 0']
    #allocation3 [shape = 'u8[16384]{0}', space=vmem, size = 0x4000, scoped, tag = 'output window, operand 0']
    loop: start=0, step=1, limit=4
    $region2: #{conv1x1_nchw.1} parent=1 // loop_pre_header
      _
    $region3: #{conv1x1_nchw.1} parent=1 // loop_header
      %s9 = sphi 0, %s13
      %p10 = scmp.ge.s32.totalorder %s9, 4
      %s16 = sphi 0, %s28
      %s17 = sphi 0, %s24
      %s18 = sphi 0, %s16
      %s19 = sphi 0, %s17
      %s20 = sphi 0, %s18
      %s21 = sphi 0, %s19
      %s33 = sphi 0, %s35
      %s36 = sphi 0, %s33
      %s37 = sphi 0, %s36
      %s53 = sphi 0, %s37
      %s57 = sphi 0, %s57
      %s59 = sphi 0, %s57
      %s60 = sphi 0, %s59
      %s74 = sphi 0, %s60
      %s78 = sphi 0, %s78
      %s80 = sphi 0, %s78
      %s81 = sphi 0, %s80
      %s95 = sphi 0, %s81
      %s103 = sphi 0, %s105
      %s106 = sphi 0, %s103
      %s107 = sphi 0, %s106
      %s123 = sphi 0, %s107
    $region4: #{conv1x1_nchw.1} parent=1 // loop_header_branch
      %12 = sbr.rel (%p10) target = $region8
    $region5: #{conv1x1_nchw.1} parent=1 // loop_body
      %s14 = ssub.s32 %s9, 1
      %s15 = ssub.s32 %s9, 2
      %s22 = sadd.s32 1, %s17
      %p23 = scmp.ge.s32.totalorder %s22, 2
      %s24 = scalar_select %p23, 0, %s22
      %s25 = sadd.s32 1, %s16
      %s26 = scalar_select %p23, %s25, %s16
      %p27 = scmp.ge.s32.totalorder %s26, 1
      %s28 = scalar_select %p27, 0, %s26
      %s29 = ssub.s32 %s16, %s28
      %s30 = ssub.s32 %s17, %s24
      %s31 = sor.u32 %s29, %s30
      %p32 = scmp.eq.s32.totalorder %s31, 0
      %s34 = sadd.s32 %s33, 1
      %s35 = scalar_select %p32, %s33, %s34
      %p38 = pneg %p32
      %p39 = scmp.eq.s32.totalorder %s9, 1
      %p40 = por %p38, %p39
      %p41 = scmp.ne.s32.totalorder %s33, %s36
      %p42 = scmp.eq.s32.totalorder %s9, 0
      %p43 = por %p41, %p42
      %p44 = scmp.ne.s32.totalorder %s33, %s36
      %p45 = scmp.eq.s32.totalorder %s14, 1
      %p46 = por %p44, %p45
      %p47 = scmp.ne.s32.totalorder %s36, %s37
      %p48 = scmp.eq.s32.totalorder %s14, 0
      %p49 = por %p47, %p48
      %p50 = scmp.ne.s32.totalorder %s36, %s37
      %p51 = scmp.eq.s32.totalorder %s15, 1
      %p52 = por %p50, %p51
      %p54 = scmp.ne.s32.totalorder %s37, %s53
      %p55 = scmp.eq.s32.totalorder %s15, 0
      %p56 = por %p54, %p55
      %s58 = sadd.s32 %s57, 1
      %p61 = scmp.eq.s32.totalorder %s9, 1
      %p62 = scmp.ne.s32.totalorder %s57, %s59
      %p63 = scmp.eq.s32.totalorder %s9, 0
      %p64 = por %p62, %p63
      %p65 = scmp.ne.s32.totalorder %s57, %s59
      %p66 = scmp.eq.s32.totalorder %s14, 1
      %p67 = por %p65, %p66
      %p68 = scmp.ne.s32.totalorder %s59, %s60
      %p69 = scmp.eq.s32.totalorder %s14, 0
      %p70 = por %p68, %p69
      %p71 = scmp.ne.s32.totalorder %s59, %s60
      %p72 = scmp.eq.s32.totalorder %s15, 1
      %p73 = por %p71, %p72
      %p75 = scmp.ne.s32.totalorder %s60, %s74
      %p76 = scmp.eq.s32.totalorder %s15, 0
      %p77 = por %p75, %p76
      %s79 = sadd.s32 %s78, 1
      %p82 = scmp.eq.s32.totalorder %s9, 1
      %p83 = scmp.ne.s32.totalorder %s78, %s80
      %p84 = scmp.eq.s32.totalorder %s9, 0
      %p85 = por %p83, %p84
      %p86 = scmp.ne.s32.totalorder %s78, %s80
      %p87 = scmp.eq.s32.totalorder %s14, 1
      %p88 = por %p86, %p87
      %p89 = scmp.ne.s32.totalorder %s80, %s81
      %p90 = scmp.eq.s32.totalorder %s14, 0
      %p91 = por %p89, %p90
      %p92 = scmp.ne.s32.totalorder %s80, %s81
      %p93 = scmp.eq.s32.totalorder %s15, 1
      %p94 = por %p92, %p93
      %p96 = scmp.ne.s32.totalorder %s81, %s95
      %p97 = scmp.eq.s32.totalorder %s15, 0
      %p98 = por %p96, %p97
      %s99 = ssub.s32 %s16, %s28
      %s100 = ssub.s32 %s17, %s24
      %s101 = sor.u32 %s99, %s100
      %p102 = scmp.eq.s32.totalorder %s101, 0
      %s104 = sadd.s32 %s103, 1
      %s105 = scalar_select %p102, %s103, %s104
      %p108 = pneg %p102
      %p109 = scmp.eq.s32.totalorder %s9, 1
      %p110 = por %p108, %p109
      %p111 = scmp.ne.s32.totalorder %s103, %s106
      %p112 = scmp.eq.s32.totalorder %s9, 0
      %p113 = por %p111, %p112
      %p114 = scmp.ne.s32.totalorder %s103, %s106
      %p115 = scmp.eq.s32.totalorder %s14, 1
      %p116 = por %p114, %p115
      %p117 = scmp.ne.s32.totalorder %s106, %s107
      %p118 = scmp.eq.s32.totalorder %s14, 0
      %p119 = por %p117, %p118
      %p120 = scmp.ne.s32.totalorder %s106, %s107
      %p121 = scmp.eq.s32.totalorder %s15, 1
      %p122 = por %p120, %p121
      %p124 = scmp.ne.s32.totalorder %s107, %s123
      %p125 = scmp.eq.s32.totalorder %s15, 0
      %p126 = por %p124, %p125
      %p127 = scmp.le.s32.totalorder 1, %s9
      %p128 = scmp.lt.s32.totalorder %s9, 3
      %p129 = pnand %p127, %p128
      %p130 = pneg %p129
      // Predicated region
      $region9: #{conv1x1_nchw.1} parent=5 // pred_check
        _
      $region10: #{conv1x1_nchw.1} parent=5 // pred_check_branch
        %132 = sbr.rel (%p129) target = $region12
      $region11: #{conv1x1_nchw.1} parent=5 // pred_region
        %s133 = ssub.s32 %s9, 1
        // Predicated region
        $region13: #{conv1x1_nchw.1} parent=11 // pred_check
          %p134 = pneg %p70
        $region14: #{conv1x1_nchw.1} parent=11 // pred_check_branch
          %136 = sbr.rel (%p134) target = $region16
        $region15: #{conv1x1_nchw.1} parent=11 // pred_region
          _
        $region16: #{conv1x1_nchw.1} parent=11 // pred_fallthru
          _
        // Predicated region
        $region17: #{conv1x1_nchw.1} parent=11 // pred_check
          %p137 = pneg %p91
        $region18: #{conv1x1_nchw.1} parent=11 // pred_check_branch
          %139 = sbr.rel (%p137) target = $region20
        $region19: #{conv1x1_nchw.1} parent=11 // pred_region
          _
        $region20: #{conv1x1_nchw.1} parent=11 // pred_fallthru
          _
      $region12: #{conv1x1_nchw.1} parent=5 // pred_fallthru
        _
      %p140 = scmp.lt.s32.totalorder %s9, 2
      // Predicated region
      $region21: #{conv1x1_nchw.1} parent=5 // pred_check
        %p141 = pneg %p140
      $region22: #{conv1x1_nchw.1} parent=5 // pred_check_branch
        %143 = sbr.rel (%p141) target = $region24
      $region23: #{conv1x1_nchw.1} parent=5 // pred_region
        // Predicated region
        $region25: #{conv1x1_nchw.1} parent=23 // pred_check
          %p144 = pneg %p43
        $region26: #{conv1x1_nchw.1} parent=23 // pred_check_branch
          %146 = sbr.rel (%p144) target = $region28
        $region27: #{conv1x1_nchw.1} parent=23 // pred_region
          %s147 = sand.u32 %s33, 1
          %s148 = sand.u32 %s33, 1
          %s149 = smul.addr %s148, 128
          %s150 = scalar_lea.vmem [#allocation2], %s149
          %s151 = smul.u32 2, %s16
          %s152 = smul.addr %s151, 16
          %s153 = sadd.s32 %s17, %s152
          %s154 = smul.addr %s153, 8
          %s155 = scalar_lea.vmem %s0, %s154
          // Predicated region
          $region29: #{conv1x1_nchw.1} parent=27 // pred_check
            _
          $region30: #{conv1x1_nchw.1} parent=27 // pred_check_branch
            %157 = sbr.rel (0) target = $region32
          $region31: #{conv1x1_nchw.1} parent=27 // pred_region
            // Predicated region
            $region33: #{conv1x1_nchw.1} parent=31 // pred_check
              _
            $region34: #{conv1x1_nchw.1} parent=31 // pred_check_branch
              %159 = sbr.rel (0) target = $region36
            $region35: #{conv1x1_nchw.1} parent=31 // pred_region
              // Predicated region
              $region48: #{conv1x1_nchw.1} parent=35 // pred_check
                _
              $region49: #{conv1x1_nchw.1} parent=35 // pred_check_branch
                %205 = sbr.rel (0) target = $region51
              $region50: #{conv1x1_nchw.1} parent=35 // pred_region
                loop: start=0, step=1, limit=1
                $region52: #{conv1x1_nchw.1} parent=50 // loop_pre_header
                  _
                $region53: #{conv1x1_nchw.1} parent=50 // loop_header
                  %s207 = sphi 0, %s211
                  %p208 = scmp.ge.s32.totalorder %s207, 1
                  %s212 = sphi %s155, %s155
                  %s213 = sphi %s150, %s150
                $region54: #{conv1x1_nchw.1} parent=50 // loop_header_branch
                  %210 = sbr.rel (%p208) target = $region58
                $region55: #{conv1x1_nchw.1} parent=50 // loop_body
                  %v214 = vld [vmem:[%s212] sm:$0xff]
                  %215 = vst [vmem:[%s213] sm:$0xff] %v214
                  %v216 = vld [vmem:[%s212 + $0x10] sm:$0xff]
                  %217 = vst [vmem:[%s213 + $0x8] sm:$0xff] %v216
                  %v218 = vld [vmem:[%s212 + $0x20] sm:$0xff]
                  %219 = vst [vmem:[%s213 + $0x10] sm:$0xff] %v218
                  %v220 = vld [vmem:[%s212 + $0x30] sm:$0xff]
                  %221 = vst [vmem:[%s213 + $0x18] sm:$0xff] %v220
                  %v222 = vld [vmem:[%s212 + $0x40] sm:$0xff]
                  %223 = vst [vmem:[%s213 + $0x20] sm:$0xff] %v222
                  %v224 = vld [vmem:[%s212 + $0x50] sm:$0xff]
                  %225 = vst [vmem:[%s213 + $0x28] sm:$0xff] %v224
                  %v226 = vld [vmem:[%s212 + $0x60] sm:$0xff]
                  %227 = vst [vmem:[%s213 + $0x30] sm:$0xff] %v226
                  %v228 = vld [vmem:[%s212 + $0x70] sm:$0xff]
                  %229 = vst [vmem:[%s213 + $0x38] sm:$0xff] %v228
                  %v230 = vld [vmem:[%s212 + $0x80] sm:$0xff]
                  %231 = vst [vmem:[%s213 + $0x40] sm:$0xff] %v230
                  %v232 = vld [vmem:[%s212 + $0x90] sm:$0xff]
                  %233 = vst [vmem:[%s213 + $0x48] sm:$0xff] %v232
                  %v234 = vld [vmem:[%s212 + $0xa0] sm:$0xff]
                  %235 = vst [vmem:[%s213 + $0x50] sm:$0xff] %v234
                  %v236 = vld [vmem:[%s212 + $0xb0] sm:$0xff]
                  %237 = vst [vmem:[%s213 + $0x58] sm:$0xff] %v236
                  %v238 = vld [vmem:[%s212 + $0xc0] sm:$0xff]
                  %239 = vst [vmem:[%s213 + $0x60] sm:$0xff] %v238
                  %v240 = vld [vmem:[%s212 + $0xd0] sm:$0xff]
                  %241 = vst [vmem:[%s213 + $0x68] sm:$0xff] %v240
                  %v242 = vld [vmem:[%s212 + $0xe0] sm:$0xff]
                  %243 = vst [vmem:[%s213 + $0x70] sm:$0xff] %v242
                  %v244 = vld [vmem:[%s212 + $0xf0] sm:$0xff]
                  %245 = vst [vmem:[%s213 + $0x78] sm:$0xff] %v244
                $region56: #{conv1x1_nchw.1} parent=50 // loop_footer
                  %s211 = sadd.s32 1, %s207
                $region57: #{conv1x1_nchw.1} parent=50 // loop_footer_branch
                  %206 = sbr.rel target = $region53
                $region58: #{conv1x1_nchw.1} parent=50 // loop_exit
                  _
              $region51: #{conv1x1_nchw.1} parent=35 // pred_fallthru
                _
              // Predicated region
              $region59: #{conv1x1_nchw.1} parent=35 // pred_check
                _
              $region60: #{conv1x1_nchw.1} parent=35 // pred_check_branch
                %247 = sbr.rel target = $region62
              $region61: #{conv1x1_nchw.1} parent=35 // pred_region
                _
              $region62: #{conv1x1_nchw.1} parent=35 // pred_fallthru
                _
            $region36: #{conv1x1_nchw.1} parent=31 // pred_fallthru
              _
            // Predicated region
            $region37: #{conv1x1_nchw.1} parent=31 // pred_check
              _
            $region38: #{conv1x1_nchw.1} parent=31 // pred_check_branch
              %161 = sbr.rel target = $region40
            $region39: #{conv1x1_nchw.1} parent=31 // pred_region
              %s163 = ssub.s32 256, 1
              loop: start=0, step=1, limit=1
              $region41: #{conv1x1_nchw.1} parent=39 // loop_pre_header
                _
              $region42: #{conv1x1_nchw.1} parent=39 // loop_header
                %s165 = sphi 0, %s169
                %p166 = scmp.ge.s32.totalorder %s165, 1
                %s170 = sphi %s155, %s155
                %s171 = sphi %s150, %s150
              $region43: #{conv1x1_nchw.1} parent=39 // loop_header_branch
                %168 = sbr.rel (%p166) target = $region47
              $region44: #{conv1x1_nchw.1} parent=39 // loop_body
                %v172 = vld [vmem:[%s170] sm:%s163]
                %173 = vst [vmem:[%s171] sm:%s163] %v172
                %v174 = vld [vmem:[%s170 + $0x10] sm:%s163]
                %175 = vst [vmem:[%s171 + $0x8] sm:%s163] %v174
                %v176 = vld [vmem:[%s170 + $0x20] sm:%s163]
                %177 = vst [vmem:[%s171 + $0x10] sm:%s163] %v176
                %v178 = vld [vmem:[%s170 + $0x30] sm:%s163]
                %179 = vst [vmem:[%s171 + $0x18] sm:%s163] %v178
                %v180 = vld [vmem:[%s170 + $0x40] sm:%s163]
                %181 = vst [vmem:[%s171 + $0x20] sm:%s163] %v180
                %v182 = vld [vmem:[%s170 + $0x50] sm:%s163]
                %183 = vst [vmem:[%s171 + $0x28] sm:%s163] %v182
                %v184 = vld [vmem:[%s170 + $0x60] sm:%s163]
                %185 = vst [vmem:[%s171 + $0x30] sm:%s163] %v184
                %v186 = vld [vmem:[%s170 + $0x70] sm:%s163]
                %187 = vst [vmem:[%s171 + $0x38] sm:%s163] %v186
                %v188 = vld [vmem:[%s170 + $0x80] sm:%s163]
                %189 = vst [vmem:[%s171 + $0x40] sm:%s163] %v188
                %v190 = vld [vmem:[%s170 + $0x90] sm:%s163]
                %191 = vst [vmem:[%s171 + $0x48] sm:%s163] %v190
                %v192 = vld [vmem:[%s170 + $0xa0] sm:%s163]
                %193 = vst [vmem:[%s171 + $0x50] sm:%s163] %v192
                %v194 = vld [vmem:[%s170 + $0xb0] sm:%s163]
                %195 = vst [vmem:[%s171 + $0x58] sm:%s163] %v194
                %v196 = vld [vmem:[%s170 + $0xc0] sm:%s163]
                %197 = vst [vmem:[%s171 + $0x60] sm:%s163] %v196
                %v198 = vld [vmem:[%s170 + $0xd0] sm:%s163]
                %199 = vst [vmem:[%s171 + $0x68] sm:%s163] %v198
                %v200 = vld [vmem:[%s170 + $0xe0] sm:%s163]
                %201 = vst [vmem:[%s171 + $0x70] sm:%s163] %v200
                %v202 = vld [vmem:[%s170 + $0xf0] sm:%s163]
                %203 = vst [vmem:[%s171 + $0x78] sm:%s163] %v202
              $region45: #{conv1x1_nchw.1} parent=39 // loop_footer
                %s169 = sadd.s32 1, %s165
              $region46: #{conv1x1_nchw.1} parent=39 // loop_footer_branch
                %164 = sbr.rel target = $region42
              $region47: #{conv1x1_nchw.1} parent=39 // loop_exit
                _
            $region40: #{conv1x1_nchw.1} parent=31 // pred_fallthru
              _
          $region32: #{conv1x1_nchw.1} parent=27 // pred_fallthru
            _
          %248 = vnop
        $region28: #{conv1x1_nchw.1} parent=23 // pred_fallthru
          _
      $region24: #{conv1x1_nchw.1} parent=5 // pred_fallthru
        _
      %p249 = scmp.le.s32.totalorder 1, %s9
      %p250 = scmp.lt.s32.totalorder %s9, 3
      %p251 = pnand %p249, %p250
      %p252 = pneg %p251
      // Predicated region
      $region63: #{conv1x1_nchw.1} parent=5 // pred_check
        _
      $region64: #{conv1x1_nchw.1} parent=5 // pred_check_branch
        %254 = sbr.rel (%p251) target = $region66
      $region65: #{conv1x1_nchw.1} parent=5 // pred_region
        %s255 = ssub.s32 %s9, 1
        %s256 = sand.u32 %s36, 1
        %s257 = sand.u32 %s36, 1
        %s258 = smul.addr %s257, 128
        %s259 = scalar_lea.vmem [#allocation2], %s258
        // Predicated region
        $region67: #{conv1x1_nchw.1} parent=65 // pred_check
          %p260 = pneg %p49
        $region68: #{conv1x1_nchw.1} parent=65 // pred_check_branch
          %262 = sbr.rel (%p260) target = $region70
        $region69: #{conv1x1_nchw.1} parent=65 // pred_region
          _
        $region70: #{conv1x1_nchw.1} parent=65 // pred_fallthru
          _
        %s263 = sand.u32 %s36, 1
        %s264 = sand.u32 %s36, 1
        %s265 = smul.addr %s264, 128
        %s266 = scalar_lea.vmem [#allocation2], %s265
        %p267 = pneg %p49
        %p268 = pneg %p46
        %p269 = pneg %p70
        %p270 = pneg %p67
        %p271 = pneg %p91
        %p272 = pneg %p88
        %p273 = pneg %p119
        %p274 = pneg %p116
        %s275 = sand.u32 %s106, 1
        %s276 = sand.u32 %s106, 1
        %s277 = smul.addr %s276, 16
        %s278 = scalar_lea.vmem [#allocation3], %s277
        %s279 = smul.u32 2, %s18
        %s280 = smul.u32 2, %s18
        %v281 = vld [vmem:[%s1] sm:$0xff]
        %v282 = vld [vmem:[%s2] sm:$0xff]
        %v283 = vld [vmem:[%s259] sm:$0xff]
        %v284 = vld [vmem:[%s259 + $0x8] sm:$0xff]
        %v285 = vld [vmem:[%s259 + $0x10] sm:$0xff]
        %v286 = vld [vmem:[%s259 + $0x18] sm:$0xff]
        %v287 = vld [vmem:[%s259 + $0x20] sm:$0xff]
        %v288 = vld [vmem:[%s259 + $0x28] sm:$0xff]
        %v289 = vld [vmem:[%s259 + $0x30] sm:$0xff]
        %v290 = vld [vmem:[%s259 + $0x38] sm:$0xff]
        %292 = vset.pattern.permute.xlu0 0
        %293 = vperm.xlu0 %292, %v282
        %v294 = vpop.permute.xlu0 %293
        %vm296 = vcmask 523264
        %v298 = vsel %vm296, %v281, 0
        %300 = vmatprep.subr.mxu0 0.0
        %301 = vmatpush1.msra.mxu0 0.0
        %302 = vmatprep.subr.mxu0 0.0
        %303 = vmatpush1.msra.mxu0 0.0
        %304 = vmatprep.subr.mxu0 0.0
        %305 = vmatpush1.msra.mxu0 0.0
        %306 = vmatprep.subr.mxu0 0.0
        %307 = vmatpush1.msra.mxu0 0.0
        %308 = vmatprep.subr.mxu0 0.0
        %309 = vmatpush1.msra.mxu0 0.0
        %310 = vmatprep.subr.mxu0 0.0
        %311 = vmatpush1.msra.mxu0 0.0
        %312 = vmatprep.subr.mxu0 0.0
        %313 = vmatpush1.msra.mxu0 0.0
        %314 = vmatprep.subr.mxu0 0.0
        %315 = vmatpush1.msra.mxu0 0.0
        %316 = vmatprep.subr.mxu0 0.0
        %317 = vmatpush1.msra.mxu0 %v290
        %318 = vmatprep.subr.mxu0 0.0
        %319 = vmatpush1.msra.mxu0 %v289
        %320 = vmatprep.subr.mxu0 0.0
        %321 = vmatpush1.msra.mxu0 %v288
        %322 = vmatprep.subr.mxu0 0.0
        %323 = vmatpush1.msra.mxu0 %v287
        %324 = vmatprep.subr.mxu0 0.0
        %325 = vmatpush1.msra.mxu0 %v286
        %326 = vmatprep.subr.mxu0 0.0
        %327 = vmatpush1.msra.mxu0 %v285
        %328 = vmatprep.subr.mxu0 0.0
        %329 = vmatpush1.msra.mxu0 %v284
        %330 = vmatprep.subr.mxu0 0.0
        %331 = vmatpush1.msra.mxu0 %v283
        %332 = vmatprep.subr.mxu0 0.0
        %333 = vmatpush2.msra.mxu0 0.0
        %334 = vmatprep.subr.mxu0 0.0
        %335 = vmatpush2.msra.mxu0 0.0
        %336 = vmatprep.subr.mxu0 0.0
        %337 = vmatpush2.msra.mxu0 0.0
        %338 = vmatprep.subr.mxu0 0.0
        %339 = vmatpush2.msra.mxu0 0.0
        %340 = vmatprep.subr.mxu0 0.0
        %341 = vmatpush2.msra.mxu0 0.0
        %342 = vmatprep.subr.mxu0 0.0
        %343 = vmatpush2.msra.mxu0 0.0
        %344 = vmatprep.subr.mxu0 0.0
        %345 = vmatpush2.msra.mxu0 0.0
        %346 = vmatprep.subr.mxu0 0.0
        %347 = vmatpush2.msra.mxu0 0.0
        %348 = vmatprep.subr.mxu0 0.0
        %349 = vmatpush2.msra.mxu0 0.0
        %350 = vmatprep.subr.mxu0 0.0
        %351 = vmatpush2.msra.mxu0 0.0
        %352 = vmatprep.subr.mxu0 0.0
        %353 = vmatpush2.msra.mxu0 0.0
        %354 = vmatprep.subr.mxu0 0.0
        %355 = vmatpush2.msra.mxu0 0.0
        %356 = vmatprep.subr.mxu0 0.0
        %357 = vmatpush2.msra.mxu0 0.0
        %358 = vmatprep.subr.mxu0 0.0
        %359 = vmatpush2.msra.mxu0 0.0
        %360 = vmatprep.subr.mxu0 0.0
        %361 = vmatpush2.msra.mxu0 0.0
        %362 = vmatprep.subr.mxu0 0.0
        %363 = vmatpush2.msra.mxu0 0.0
        %364 = vmatprep.mubr.f32.mxu0 0.0
        %365 = vmatmul.mubr.f32.gmra.mxu0 %v298
        %v366 = vpop.f32.mrf.mxu0
        %v367 = vadd.f32 %v294, %v366
        %v368 = vpop.f32.mrf.mxu0
        %369 = vdwg.mxu0
        %370 = vst [vmem:[%s278] sm:$0xff] %v367
        %s371 = scalar_lea.vmem %s259, 64 [#allocation2]
        %v372 = vld [vmem:[%s371] sm:$0xff]
        %v373 = vld [vmem:[%s371 + $0x8] sm:$0xff]
        %v374 = vld [vmem:[%s371 + $0x10] sm:$0xff]
        %v375 = vld [vmem:[%s371 + $0x18] sm:$0xff]
        %v376 = vld [vmem:[%s371 + $0x20] sm:$0xff]
        %v377 = vld [vmem:[%s371 + $0x28] sm:$0xff]
        %v378 = vld [vmem:[%s371 + $0x30] sm:$0xff]
        %v379 = vld [vmem:[%s371 + $0x38] sm:$0xff]
        %380 = vmatprep.subr.mxu0 0.0
        %381 = vmatpush1.msra.mxu0 0.0
        %382 = vmatprep.subr.mxu0 0.0
        %383 = vmatpush1.msra.mxu0 0.0
        %384 = vmatprep.subr.mxu0 0.0
        %385 = vmatpush1.msra.mxu0 0.0
        %386 = vmatprep.subr.mxu0 0.0
        %387 = vmatpush1.msra.mxu0 0.0
        %388 = vmatprep.subr.mxu0 0.0
        %389 = vmatpush1.msra.mxu0 0.0
        %390 = vmatprep.subr.mxu0 0.0
        %391 = vmatpush1.msra.mxu0 0.0
        %392 = vmatprep.subr.mxu0 0.0
        %393 = vmatpush1.msra.mxu0 0.0
        %394 = vmatprep.subr.mxu0 0.0
        %395 = vmatpush1.msra.mxu0 0.0
        %396 = vmatprep.subr.mxu0 0.0
        %397 = vmatpush1.msra.mxu0 %v379
        %398 = vmatprep.subr.mxu0 0.0
        %399 = vmatpush1.msra.mxu0 %v378
        %400 = vmatprep.subr.mxu0 0.0
        %401 = vmatpush1.msra.mxu0 %v377
        %402 = vmatprep.subr.mxu0 0.0
        %403 = vmatpush1.msra.mxu0 %v376
        %404 = vmatprep.subr.mxu0 0.0
        %405 = vmatpush1.msra.mxu0 %v375
        %406 = vmatprep.subr.mxu0 0.0
        %407 = vmatpush1.msra.mxu0 %v374
        %408 = vmatprep.subr.mxu0 0.0
        %409 = vmatpush1.msra.mxu0 %v373
        %410 = vmatprep.subr.mxu0 0.0
        %411 = vmatpush1.msra.mxu0 %v372
        %412 = vmatprep.subr.mxu0 0.0
        %413 = vmatpush2.msra.mxu0 0.0
        %414 = vmatprep.subr.mxu0 0.0
        %415 = vmatpush2.msra.mxu0 0.0
        %416 = vmatprep.subr.mxu0 0.0
        %417 = vmatpush2.msra.mxu0 0.0
        %418 = vmatprep.subr.mxu0 0.0
        %419 = vmatpush2.msra.mxu0 0.0
        %420 = vmatprep.subr.mxu0 0.0
        %421 = vmatpush2.msra.mxu0 0.0
        %422 = vmatprep.subr.mxu0 0.0
        %423 = vmatpush2.msra.mxu0 0.0
        %424 = vmatprep.subr.mxu0 0.0
        %425 = vmatpush2.msra.mxu0 0.0
        %426 = vmatprep.subr.mxu0 0.0
        %427 = vmatpush2.msra.mxu0 0.0
        %428 = vmatprep.subr.mxu0 0.0
        %429 = vmatpush2.msra.mxu0 0.0
        %430 = vmatprep.subr.mxu0 0.0
        %431 = vmatpush2.msra.mxu0 0.0
        %432 = vmatprep.subr.mxu0 0.0
        %433 = vmatpush2.msra.mxu0 0.0
        %434 = vmatprep.subr.mxu0 0.0
        %435 = vmatpush2.msra.mxu0 0.0
        %436 = vmatprep.subr.mxu0 0.0
        %437 = vmatpush2.msra.mxu0 0.0
        %438 = vmatprep.subr.mxu0 0.0
        %439 = vmatpush2.msra.mxu0 0.0
        %440 = vmatprep.subr.mxu0 0.0
        %441 = vmatpush2.msra.mxu0 0.0
        %442 = vmatprep.subr.mxu0 0.0
        %443 = vmatpush2.msra.mxu0 0.0
        %444 = vmatprep.mubr.f32.mxu0 0.0
        %445 = vmatmul.mubr.f32.gmra.mxu0 %v298
        %v446 = vpop.f32.mrf.mxu0
        %v447 = vadd.f32 %v294, %v446
        %v448 = vpop.f32.mrf.mxu0
        %449 = vdwg.mxu0
        %s450 = scalar_lea.vmem %s278, 8 [#allocation3]
        %451 = vst [vmem:[%s450] sm:$0xff] %v447
        %s452 = sand.u32 %s106, 1
        %s453 = sand.u32 %s106, 1
        %s454 = smul.addr %s453, 16
        %s455 = scalar_lea.vmem [#allocation3], %s454
        // Predicated region
        $region71: #{conv1x1_nchw.1} parent=65 // pred_check
          %p456 = pneg %p116
        $region72: #{conv1x1_nchw.1} parent=65 // pred_check_branch
          %458 = sbr.rel (%p456) target = $region74
        $region73: #{conv1x1_nchw.1} parent=65 // pred_region
          %s459 = smul.u32 2, %s18
          %s460 = smul.addr %s459, 2
          %s461 = sadd.s32 %s19, %s460
          %s462 = smul.addr %s461, 8
          %s463 = scalar_lea.vmem %s3, %s462
          // Predicated region
          $region75: #{conv1x1_nchw.1} parent=73 // pred_check
            _
          $region76: #{conv1x1_nchw.1} parent=73 // pred_check_branch
            %465 = sbr.rel (0) target = $region78
          $region77: #{conv1x1_nchw.1} parent=73 // pred_region
            // Predicated region
            $region79: #{conv1x1_nchw.1} parent=77 // pred_check
              _
            $region80: #{conv1x1_nchw.1} parent=77 // pred_check_branch
              %467 = sbr.rel (0) target = $region82
            $region81: #{conv1x1_nchw.1} parent=77 // pred_region
              // Predicated region
              $region94: #{conv1x1_nchw.1} parent=81 // pred_check
                _
              $region95: #{conv1x1_nchw.1} parent=81 // pred_check_branch
                %485 = sbr.rel (0) target = $region97
              $region96: #{conv1x1_nchw.1} parent=81 // pred_region
                loop: start=0, step=1, limit=1
                $region98: #{conv1x1_nchw.1} parent=96 // loop_pre_header
                  _
                $region99: #{conv1x1_nchw.1} parent=96 // loop_header
                  %s487 = sphi 0, %s491
                  %p488 = scmp.ge.s32.totalorder %s487, 1
                  %s492 = sphi %s455, %s455
                  %s493 = sphi %s463, %s463
                $region100: #{conv1x1_nchw.1} parent=96 // loop_header_branch
                  %490 = sbr.rel (%p488) target = $region104
                $region101: #{conv1x1_nchw.1} parent=96 // loop_body
                  %v494 = vld [vmem:[%s492] sm:$0xff]
                  %495 = vst [vmem:[%s493] sm:$0xff] %v494
                  %v496 = vld [vmem:[%s492 + $0x8] sm:$0xff]
                  %497 = vst [vmem:[%s493 + $0x10] sm:$0xff] %v496
                $region102: #{conv1x1_nchw.1} parent=96 // loop_footer
                  %s491 = sadd.s32 1, %s487
                $region103: #{conv1x1_nchw.1} parent=96 // loop_footer_branch
                  %486 = sbr.rel target = $region99
                $region104: #{conv1x1_nchw.1} parent=96 // loop_exit
                  _
              $region97: #{conv1x1_nchw.1} parent=81 // pred_fallthru
                _
              // Predicated region
              $region105: #{conv1x1_nchw.1} parent=81 // pred_check
                _
              $region106: #{conv1x1_nchw.1} parent=81 // pred_check_branch
                %499 = sbr.rel target = $region108
              $region107: #{conv1x1_nchw.1} parent=81 // pred_region
                _
              $region108: #{conv1x1_nchw.1} parent=81 // pred_fallthru
                _
            $region82: #{conv1x1_nchw.1} parent=77 // pred_fallthru
              _
            // Predicated region
            $region83: #{conv1x1_nchw.1} parent=77 // pred_check
              _
            $region84: #{conv1x1_nchw.1} parent=77 // pred_check_branch
              %469 = sbr.rel target = $region86
            $region85: #{conv1x1_nchw.1} parent=77 // pred_region
              %s471 = ssub.s32 256, 1
              loop: start=0, step=1, limit=1
              $region87: #{conv1x1_nchw.1} parent=85 // loop_pre_header
                _
              $region88: #{conv1x1_nchw.1} parent=85 // loop_header
                %s473 = sphi 0, %s477
                %p474 = scmp.ge.s32.totalorder %s473, 1
                %s478 = sphi %s455, %s455
                %s479 = sphi %s463, %s463
              $region89: #{conv1x1_nchw.1} parent=85 // loop_header_branch
                %476 = sbr.rel (%p474) target = $region93
              $region90: #{conv1x1_nchw.1} parent=85 // loop_body
                %v480 = vld [vmem:[%s478] sm:%s471]
                %481 = vst [vmem:[%s479] sm:%s471] %v480
                %v482 = vld [vmem:[%s478 + $0x8] sm:%s471]
                %483 = vst [vmem:[%s479 + $0x10] sm:%s471] %v482
              $region91: #{conv1x1_nchw.1} parent=85 // loop_footer
                %s477 = sadd.s32 1, %s473
              $region92: #{conv1x1_nchw.1} parent=85 // loop_footer_branch
                %472 = sbr.rel target = $region88
              $region93: #{conv1x1_nchw.1} parent=85 // loop_exit
                _
            $region86: #{conv1x1_nchw.1} parent=77 // pred_fallthru
              _
          $region78: #{conv1x1_nchw.1} parent=73 // pred_fallthru
            _
          %500 = vnop
        $region74: #{conv1x1_nchw.1} parent=65 // pred_fallthru
          _
      $region66: #{conv1x1_nchw.1} parent=5 // pred_fallthru
        _
      %p501 = scmp.le.s32.totalorder 2, %s9
      // Predicated region
      $region109: #{conv1x1_nchw.1} parent=5 // pred_check
        %p502 = pneg %p501
      $region110: #{conv1x1_nchw.1} parent=5 // pred_check_branch
        %504 = sbr.rel (%p502) target = $region112
      $region111: #{conv1x1_nchw.1} parent=5 // pred_region
        %s505 = ssub.s32 %s9, 2
        // Predicated region
        $region113: #{conv1x1_nchw.1} parent=111 // pred_check
          %p506 = pneg %p122
        $region114: #{conv1x1_nchw.1} parent=111 // pred_check_branch
          %508 = sbr.rel (%p506) target = $region116
        $region115: #{conv1x1_nchw.1} parent=111 // pred_region
          %s509 = sand.u32 %s107, 1
          %s510 = sand.u32 %s107, 1
          %s511 = smul.addr %s510, 16
          %s512 = scalar_lea.vmem [#allocation3], %s511
        $region116: #{conv1x1_nchw.1} parent=111 // pred_fallthru
          _
      $region112: #{conv1x1_nchw.1} parent=5 // pred_fallthru
        _
    $region6: #{conv1x1_nchw.1} parent=1 // loop_footer
      %s13 = sadd.s32 1, %s9
    $region7: #{conv1x1_nchw.1} parent=1 // loop_footer_branch
      %8 = sbr.rel target = $region3
    $region8: #{conv1x1_nchw.1} parent=1 // loop_exit
      _

</llo_original>
